<compile_context>
chip_gen: v5e
topology: v5e:2x2
jax: 0.10.0
libtpu: 0.0.40
codegen_flags: <defaults>
</compile_context>

<pallas_src>
import math
import functools

import jax
import jax.numpy as jnp
from jax.experimental import pallas as pl
from jax.experimental.pallas import tpu as pltpu


def _attention_kernel(x_kv_ref, x_q_ref, wq_ref, bq_ref, wkv_ref, bkv_ref,
                      o_ref, kv_ref, *, num_heads: int, head_dim: int,
                      mxu_dtype):
    """One grid step == (batch block b, query tile qi).

    x_kv_ref : (bt, S,  H)   hidden_states, full sequence (for K/V)
    x_q_ref  : (bt, tq, H)   hidden_states, this query tile (for Q)
    wq_ref   : (H, H)        Wq^T / sqrt(d)            (bf16)
    bq_ref   : (1, H)        bq / sqrt(d)              (f32)
    wkv_ref  : (H, 2H)       [Wk^T | Wv^T]             (bf16)
    bkv_ref  : (1, 2H)       [bk | bv]                 (f32)
    o_ref    : (bt, tq, H)   context layer tile
    kv_ref   : (bt, S, 2H)   bf16 VMEM scratch, persists across q-tiles
    """
    bt, s_full, hidden = x_kv_ref.shape
    _, tq, _ = x_q_ref.shape
    qi = pl.program_id(1)

    # --- K/V projection: once per batch block, cached across query tiles. ---
    @pl.when(qi == 0)
    def _project_kv():
        x2 = x_kv_ref[...].reshape(bt * s_full, hidden)
        kv = jnp.dot(x2, wkv_ref[...], preferred_element_type=jnp.float32)
        kv = kv + bkv_ref[...]
        kv_ref[...] = kv.reshape(bt, s_full, 2 * hidden).astype(mxu_dtype)

    # --- Q projection for this query tile (scale already folded in). -------
    xq = x_q_ref[...].reshape(bt * tq, hidden)
    q = jnp.dot(xq, wq_ref[...], preferred_element_type=jnp.float32)
    q = (q + bq_ref[...]).reshape(bt, tq, hidden).astype(mxu_dtype)

    # --- Per-head attention (static unroll; num_heads is small). -----------
    for h in range(num_heads):
        lo = h * head_dim
        k = kv_ref[:, :, lo:lo + head_dim]                        # (bt,S,d)
        v = kv_ref[:, :, hidden + lo:hidden + lo + head_dim]      # (bt,S,d)
        qh = q[:, :, lo:lo + head_dim]                            # (bt,tq,d)

        # Contract on the last dim of both operands (no explicit k.T).
        scores = jnp.einsum("bqd,bkd->bqk", qh, k,
                            preferred_element_type=jnp.float32)   # (bt,tq,S)

        # Numerically stable softmax over keys; normalization is deferred to
        # the (tq, d) context so the (tq, S) tensor is never rescaled.
        m = jnp.max(scores, axis=-1, keepdims=True)
        e = jnp.exp(scores - m)
        denom = jnp.sum(e, axis=-1, keepdims=True)
        # dropout: identity (eval mode)

        ctx = jnp.einsum("bqk,bkd->bqd", e.astype(mxu_dtype), v,
                         preferred_element_type=jnp.float32)      # (bt,tq,d)
        ctx = ctx * pl.reciprocal(denom, approx=True)

        # Direct per-head write into the output tile (no staging scratch).
        o_ref[:, :, lo:lo + head_dim] = ctx.astype(o_ref.dtype)


def _tensorcore_count() -> int:
    """Best-effort TC-per-chip count (2 on v7x, 1 on v5e/v6e)."""
    try:
        dev = jax.devices()[0]
        for attr in ("num_cores", "core_count", "cores_per_chip"):
            v = getattr(dev, attr, None)
            if isinstance(v, int) and v >= 1:
                return v
    except Exception:
        pass
    return 1


def _physical_vmem_bytes() -> int:
    try:
        info = pltpu.get_tpu_info()
        v = getattr(info, "vmem_capacity_bytes", None)
        if v:
            return int(v)
    except Exception:
        pass
    return 64 * 1024 * 1024  # conservative: v7x per-TC VMEM


def _pick_blocks(batch: int, seq: int, tc_count: int):
    """(bt, tq): query tile <= 512 (divisor of S, multiple of 8); batch block
    targets ~512 query rows per step but keeps >= tc_count parallel batch
    steps so a megacore chip shards the batch axis."""
    tq = seq
    if seq > 512:
        for cand in range(512, 7, -8):
            if seq % cand == 0:
                tq = cand
                break
    bt = max(1, min(batch, max(1, 512 // max(tq, 1))))
    while bt > 1 and (batch // bt) < tc_count:
        bt -= 1
    while batch % bt:
        bt -= 1
    return bt, tq


def _vmem_limit_bytes(bt, tq, seq, hidden, x_bytes, out_bytes, mxu_bytes):
    dbl = 2  # double-buffered pipeline blocks
    x_kv = dbl * bt * seq * hidden * x_bytes
    x_q = dbl * bt * tq * hidden * x_bytes
    out = dbl * bt * tq * hidden * out_bytes
    w = dbl * (hidden * hidden + hidden * 2 * hidden) * mxu_bytes
    bias = dbl * 3 * hidden * 4
    kv_scr = bt * seq * 2 * hidden * mxu_bytes
    proj = bt * seq * 2 * hidden * 4 + bt * tq * hidden * 4   # f32 matmul out
    smax = 2 * 2 * bt * tq * seq * 4                          # scores + exp
    est = int((x_kv + x_q + out + w + bias + kv_scr + proj + smax) * 1.3)
    phys = _physical_vmem_bytes()
    return max(min(est, int(phys * 0.75)), 32 * 1024 * 1024)


def superglue_self_attention(hidden_states, wq, bq, wk, bk, wv, bv, *,
                             num_heads: int, batch_block=None,
                             query_block=None, mxu_dtype=jnp.bfloat16):
    """hidden_states: (B, S, H); w*: (H, H) nn.Linear weights (out, in);
    b*: (H,). Returns the context layer (B, S, H)."""
    B, S, H = hidden_states.shape
    assert H % num_heads == 0
    head_dim = H // num_heads
    inv_scale = 1.0 / math.sqrt(head_dim)

    # Host-side prep: pre-transpose, fold 1/sqrt(d) into the query projection,
    # fuse K|V, cast MXU operands to bf16 (f32 accumulation stays in-kernel).
    w_q = (wq.T * inv_scale).astype(mxu_dtype)                      # (H, H)
    b_q = (bq * inv_scale).reshape(1, H).astype(jnp.float32)        # (1, H)
    w_kv = jnp.concatenate([wk.T, wv.T], axis=1).astype(mxu_dtype)  # (H, 2H)
    b_kv = jnp.concatenate([bk, bv]).reshape(1, 2 * H).astype(jnp.float32)
    x = hidden_states.astype(mxu_dtype)

    tc = _tensorcore_count()
    bt_auto, tq_auto = _pick_blocks(B, S, tc)
    bt = batch_block if batch_block is not None else bt_auto
    tq = query_block if query_block is not None else tq_auto
    assert B % bt == 0 and S % tq == 0

    vmem_limit = _vmem_limit_bytes(
        bt, tq, S, H,
        x_bytes=jnp.dtype(mxu_dtype).itemsize,
        out_bytes=jnp.dtype(hidden_states.dtype).itemsize,
        mxu_bytes=jnp.dtype(mxu_dtype).itemsize)

    kernel = functools.partial(_attention_kernel, num_heads=num_heads,
                               head_dim=head_dim, mxu_dtype=mxu_dtype)

    return pl.pallas_call(
        kernel,
        out_shape=jax.ShapeDtypeStruct((B, S, H), hidden_states.dtype),
        grid_spec=pltpu.PrefetchScalarGridSpec(
            num_scalar_prefetch=0,
            grid=(B // bt, S // tq),
            in_specs=[
                pl.BlockSpec((bt, S, H), lambda b, qi: (b, 0, 0)),    # x (K/V)
                pl.BlockSpec((bt, tq, H), lambda b, qi: (b, qi, 0)),  # x (Q)
                pl.BlockSpec((H, H), lambda b, qi: (0, 0)),           # Wq^T/√d
                pl.BlockSpec((1, H), lambda b, qi: (0, 0)),           # bq/√d
                pl.BlockSpec((H, 2 * H), lambda b, qi: (0, 0)),       # [Wk|Wv]^T
                pl.BlockSpec((1, 2 * H), lambda b, qi: (0, 0)),       # [bk|bv]
            ],
            out_specs=pl.BlockSpec((bt, tq, H), lambda b, qi: (b, qi, 0)),
            scratch_shapes=[pltpu.VMEM((bt, S, 2 * H), mxu_dtype)],
        ),
        compiler_params=pltpu.CompilerParams(
            dimension_semantics=("parallel", "arbitrary"),
            vmem_limit_bytes=vmem_limit),
    )(x, x, w_q, b_q, w_kv, b_kv)


def _reference(hidden_states, wq, bq, wk, bk, wv, bv, num_heads):
    """Pure-JAX f32 reference matching the torch forward (default path)."""
    B, S, H = hidden_states.shape
    d = H // num_heads
    q = hidden_states @ wq.T + bq
    k = hidden_states @ wk.T + bk
    v = hidden_states @ wv.T + bv
    q = q.reshape(B, S, num_heads, d).transpose(0, 2, 1, 3)
    k = k.reshape(B, S, num_heads, d).transpose(0, 2, 1, 3)
    v = v.reshape(B, S, num_heads, d).transpose(0, 2, 1, 3)
    scores = jnp.einsum("bhqd,bhkd->bhqk", q, k) / math.sqrt(d)
    probs = jax.nn.softmax(scores, axis=-1)
    ctx = jnp.einsum("bhqk,bhkd->bhqd", probs, v)
    return ctx.transpose(0, 2, 1, 3).reshape(B, S, H)


if __name__ == "__main__":
    # Small, module-consistent shapes: batch=2, seq=16, hidden=32, heads=4.
    B, S, H = 2, 16, 32
    NUM_HEADS = 4

    key = jax.random.PRNGKey(0)
    ks = jax.random.split(key, 7)
    hidden_states = jax.random.normal(ks[0], (B, S, H), dtype=jnp.float32)

    # Deterministic synthetic nn.Linear-shaped parameters.
    scale = 1.0 / math.sqrt(H)
    wq = jax.random.uniform(ks[1], (H, H), jnp.float32, -scale, scale)
    wk = jax.random.uniform(ks[2], (H, H), jnp.float32, -scale, scale)
    wv = jax.random.uniform(ks[3], (H, H), jnp.float32, -scale, scale)
    bq = jax.random.uniform(ks[4], (H,), jnp.float32, -scale, scale)
    bk = jax.random.uniform(ks[5], (H,), jnp.float32, -scale, scale)
    bv = jax.random.uniform(ks[6], (H,), jnp.float32, -scale, scale)

    out = superglue_self_attention(hidden_states, wq, bq, wk, bk, wv, bv,
                                   num_heads=NUM_HEADS)
    out = jax.block_until_ready(out)

    ref = _reference(hidden_states, wq, bq, wk, bk, wv, bv, NUM_HEADS)
    assert out.shape == (B, S, H)
    # Tolerance accounts for bf16 MXU operands + the approx EUP reciprocal.
    assert jnp.allclose(out, ref, atol=2e-2, rtol=2e-2), "mismatch vs reference"

    print("KERNEL_OK")
</pallas_src>

<mosaic_0001>
module attributes {stable_mosaic.version = 11 : i64} {
  func.func @_attention_kernel(%arg0: i32, %arg1: i32, %arg2: memref<2x16x32xbf16, #tpu.memory_space<vmem>>, %arg3: memref<2x16x32xbf16, #tpu.memory_space<vmem>>, %arg4: memref<32x32xbf16, #tpu.memory_space<vmem>>, %arg5: memref<1x32xf32, #tpu.memory_space<vmem>>, %arg6: memref<32x64xbf16, #tpu.memory_space<vmem>>, %arg7: memref<1x64xf32, #tpu.memory_space<vmem>>, %arg8: memref<2x16x32xf32, #tpu.memory_space<vmem>>, %arg9: memref<2x16x64xbf16, #tpu.memory_space<vmem>>) attributes {dimension_semantics = [#tpu.dimension_semantics<parallel>, #tpu.dimension_semantics<arbitrary>], iteration_bounds = array<i64: 1, 1>, scalar_prefetch = 0 : i64, scratch_operands = 1 : i64, tpu.core_type = #tpu.core_type<tc>, window_params = [{transform_indices = @transform_0, window_bounds = array<i64: 2, 16, 32>}, {transform_indices = @transform_1, window_bounds = array<i64: 2, 16, 32>}, {pipeline_mode = #tpu.pipeline_mode<synchronous>, transform_indices = @transform_2, window_bounds = array<i64: 32, 32>}, {pipeline_mode = #tpu.pipeline_mode<synchronous>, transform_indices = @transform_3, window_bounds = array<i64: 1, 32>}, {pipeline_mode = #tpu.pipeline_mode<synchronous>, transform_indices = @transform_4, window_bounds = array<i64: 32, 64>}, {pipeline_mode = #tpu.pipeline_mode<synchronous>, transform_indices = @transform_5, window_bounds = array<i64: 1, 64>}, {transform_indices = @transform_6, window_bounds = array<i64: 2, 16, 32>}]} {
    %c0_i32 = arith.constant 0 : i32
    %0 = arith.cmpi eq, %arg1, %c0_i32 : i32
    %1 = arith.extui %0 : i1 to i32
    %c0_i32_0 = arith.constant 0 : i32
    %2 = arith.cmpi ne, %1, %c0_i32_0 : i32
    scf.if %2 {
      %c0_52 = arith.constant 0 : index
      %c0_53 = arith.constant 0 : index
      %c0_54 = arith.constant 0 : index
      %80 = vector.load %arg2[%c0_52, %c0_53, %c0_54] : memref<2x16x32xbf16, #tpu.memory_space<vmem>>, vector<2x16x32xbf16>
      %81 = vector.shape_cast %80 : vector<2x16x32xbf16> to vector<32x32xbf16>
      %c0_55 = arith.constant 0 : index
      %c0_56 = arith.constant 0 : index
      %82 = vector.load %arg6[%c0_55, %c0_56] : memref<32x64xbf16, #tpu.memory_space<vmem>>, vector<32x64xbf16>
      %cst_57 = arith.constant dense<0.000000e+00> : vector<32x64xf32>
      %83 = tpu.matmul %81, %82, %cst_57 {dimension_numbers = #tpu.dot_dimension_numbers<[1], [0], [0], [1], [0, 0, 1, 1], [], []>} : vector<32x32xbf16>, vector<32x64xbf16>, vector<32x64xf32> -> vector<32x64xf32>
      %c0_58 = arith.constant 0 : index
      %c0_59 = arith.constant 0 : index
      %84 = vector.load %arg7[%c0_58, %c0_59] : memref<1x64xf32, #tpu.memory_space<vmem>>, vector<1x64xf32>
      %85 = vector.broadcast %84 : vector<1x64xf32> to vector<32x64xf32>
      %86 = arith.addf %83, %85 : vector<32x64xf32>
      %87 = vector.shape_cast %86 : vector<32x64xf32> to vector<2x16x64xf32>
      %88 = arith.truncf %87 : vector<2x16x64xf32> to vector<2x16x64xbf16>
      %c0_60 = arith.constant 0 : index
      %c0_61 = arith.constant 0 : index
      %c0_62 = arith.constant 0 : index
      %89 = vector.load %arg9[%c0_60, %c0_61, %c0_62] : memref<2x16x64xbf16, #tpu.memory_space<vmem>>, vector<2x16x64xbf16>
      tpu.vector_store %arg9[%c0_60, %c0_61, %c0_62], %88 {strides = array<i32>} : memref<2x16x64xbf16, #tpu.memory_space<vmem>>, vector<2x16x64xbf16>,
    } else {
    }
    %c0 = arith.constant 0 : index
    %c0_1 = arith.constant 0 : index
    %c0_2 = arith.constant 0 : index
    %3 = vector.load %arg3[%c0, %c0_1, %c0_2] : memref<2x16x32xbf16, #tpu.memory_space<vmem>>, vector<2x16x32xbf16>
    %4 = vector.shape_cast %3 : vector<2x16x32xbf16> to vector<32x32xbf16>
    %c0_3 = arith.constant 0 : index
    %c0_4 = arith.constant 0 : index
    %5 = vector.load %arg4[%c0_3, %c0_4] : memref<32x32xbf16, #tpu.memory_space<vmem>>, vector<32x32xbf16>
    %cst = arith.constant dense<0.000000e+00> : vector<32x32xf32>
    %6 = tpu.matmul %4, %5, %cst {dimension_numbers = #tpu.dot_dimension_numbers<[1], [0], [0], [1], [0, 0, 1, 1], [], []>} : vector<32x32xbf16>, vector<32x32xbf16>, vector<32x32xf32> -> vector<32x32xf32>
    %c0_5 = arith.constant 0 : index
    %c0_6 = arith.constant 0 : index
    %7 = vector.load %arg5[%c0_5, %c0_6] : memref<1x32xf32, #tpu.memory_space<vmem>>, vector<1x32xf32>
    %8 = vector.broadcast %7 : vector<1x32xf32> to vector<32x32xf32>
    %9 = arith.addf %6, %8 : vector<32x32xf32>
    %10 = vector.shape_cast %9 : vector<32x32xf32> to vector<2x16x32xf32>
    %11 = arith.truncf %10 : vector<2x16x32xf32> to vector<2x16x32xbf16>
    %c0_7 = arith.constant 0 : index
    %c0_8 = arith.constant 0 : index
    %c0_9 = arith.constant 0 : index
    %12 = vector.load %arg9[%c0_7, %c0_8, %c0_9] : memref<2x16x64xbf16, #tpu.memory_space<vmem>>, vector<2x16x8xbf16>
    %c0_10 = arith.constant 0 : index
    %c0_11 = arith.constant 0 : index
    %c32 = arith.constant 32 : index
    %13 = vector.load %arg9[%c0_10, %c0_11, %c32] : memref<2x16x64xbf16, #tpu.memory_space<vmem>>, vector<2x16x8xbf16>
    %14 = vector.extract_strided_slice %11 {offsets = [0, 0, 0], sizes = [2, 16, 8], strides = [1, 1, 1]} : vector<2x16x32xbf16> to vector<2x16x8xbf16>
    "tpu.trace_start"() <{level = 10 : i32, message = "bqd,bkd->bqk"}> : () -> ()
    %cst_12 = arith.constant dense<0.000000e+00> : vector<2x16x16xf32>
    %15 = tpu.matmul %14, %12, %cst_12 {dimension_numbers = #tpu.dot_dimension_numbers<[2], [2], [1], [1], [0, 0, 0, 1, 1, 1], [0], [0]>} : vector<2x16x8xbf16>, vector<2x16x8xbf16>, vector<2x16x16xf32> -> vector<2x16x16xf32>
    "tpu.trace_stop"() : () -> ()
    %cst_13 = arith.constant dense<0xFF800000> : vector<2x16xf32>
    %16 = vector.multi_reduction <maximumf>, %15, %cst_13 [2] : vector<2x16x16xf32> to vector<2x16xf32>
    %17 = vector.shape_cast %16 : vector<2x16xf32> to vector<2x16x1xf32>
    %18 = vector.broadcast %17 : vector<2x16x1xf32> to vector<2x16x16xf32>
    %19 = arith.subf %15, %18 : vector<2x16x16xf32>
    %20 = math.exp %19 : vector<2x16x16xf32>
    %cst_14 = arith.constant dense<0.000000e+00> : vector<2x16xf32>
    %21 = vector.multi_reduction <add>, %20, %cst_14 [2] : vector<2x16x16xf32> to vector<2x16xf32>
    %22 = vector.shape_cast %21 : vector<2x16xf32> to vector<2x16x1xf32>
    %23 = arith.truncf %20 : vector<2x16x16xf32> to vector<2x16x16xbf16>
    "tpu.trace_start"() <{level = 10 : i32, message = "bqk,bkd->bqd"}> : () -> ()
    %cst_15 = arith.constant dense<0.000000e+00> : vector<2x16x8xf32>
    %24 = tpu.matmul %23, %13, %cst_15 {dimension_numbers = #tpu.dot_dimension_numbers<[2], [1], [1], [2], [0, 0, 0, 1, 1, 2], [0], [0]>} : vector<2x16x16xbf16>, vector<2x16x8xbf16>, vector<2x16x8xf32> -> vector<2x16x8xf32>
    "tpu.trace_stop"() : () -> ()
    %25 = tpu.reciprocal %22 {approx = true} : vector<2x16x1xf32> -> vector<2x16x1xf32>
    %26 = vector.broadcast %25 : vector<2x16x1xf32> to vector<2x16x8xf32>
    %27 = arith.mulf %24, %26 : vector<2x16x8xf32>
    %c0_16 = arith.constant 0 : index
    %c0_17 = arith.constant 0 : index
    %c0_18 = arith.constant 0 : index
    %28 = vector.load %arg8[%c0_16, %c0_17, %c0_18] : memref<2x16x32xf32, #tpu.memory_space<vmem>>, vector<2x16x8xf32>
    tpu.vector_store %arg8[%c0_16, %c0_17, %c0_18], %27 {strides = array<i32>} : memref<2x16x32xf32, #tpu.memory_space<vmem>>, vector<2x16x8xf32>,
    %c0_19 = arith.constant 0 : index
    %c0_20 = arith.constant 0 : index
    %c8 = arith.constant 8 : index
    %29 = vector.load %arg9[%c0_19, %c0_20, %c8] : memref<2x16x64xbf16, #tpu.memory_space<vmem>>, vector<2x16x8xbf16>
    %c0_21 = arith.constant 0 : index
    %c0_22 = arith.constant 0 : index
    %c40 = arith.constant 40 : index
    %30 = vector.load %arg9[%c0_21, %c0_22, %c40] : memref<2x16x64xbf16, #tpu.memory_space<vmem>>, vector<2x16x8xbf16>
    %31 = vector.extract_strided_slice %11 {offsets = [0, 0, 8], sizes = [2, 16, 8], strides = [1, 1, 1]} : vector<2x16x32xbf16> to vector<2x16x8xbf16>
    "tpu.trace_start"() <{level = 10 : i32, message = "bqd,bkd->bqk"}> : () -> ()
    %cst_23 = arith.constant dense<0.000000e+00> : vector<2x16x16xf32>
    %32 = tpu.matmul %31, %29, %cst_23 {dimension_numbers = #tpu.dot_dimension_numbers<[2], [2], [1], [1], [0, 0, 0, 1, 1, 1], [0], [0]>} : vector<2x16x8xbf16>, vector<2x16x8xbf16>, vector<2x16x16xf32> -> vector<2x16x16xf32>
    "tpu.trace_stop"() : () -> ()
    %cst_24 = arith.constant dense<0xFF800000> : vector<2x16xf32>
    %33 = vector.multi_reduction <maximumf>, %32, %cst_24 [2] : vector<2x16x16xf32> to vector<2x16xf32>
    %34 = vector.shape_cast %33 : vector<2x16xf32> to vector<2x16x1xf32>
    %35 = vector.broadcast %34 : vector<2x16x1xf32> to vector<2x16x16xf32>
    %36 = arith.subf %32, %35 : vector<2x16x16xf32>
    %37 = math.exp %36 : vector<2x16x16xf32>
    %cst_25 = arith.constant dense<0.000000e+00> : vector<2x16xf32>
    %38 = vector.multi_reduction <add>, %37, %cst_25 [2] : vector<2x16x16xf32> to vector<2x16xf32>
    %39 = vector.shape_cast %38 : vector<2x16xf32> to vector<2x16x1xf32>
    %40 = arith.truncf %37 : vector<2x16x16xf32> to vector<2x16x16xbf16>
    "tpu.trace_start"() <{level = 10 : i32, message = "bqk,bkd->bqd"}> : () -> ()
    %cst_26 = arith.constant dense<0.000000e+00> : vector<2x16x8xf32>
    %41 = tpu.matmul %40, %30, %cst_26 {dimension_numbers = #tpu.dot_dimension_numbers<[2], [1], [1], [2], [0, 0, 0, 1, 1, 2], [0], [0]>} : vector<2x16x16xbf16>, vector<2x16x8xbf16>, vector<2x16x8xf32> -> vector<2x16x8xf32>
    "tpu.trace_stop"() : () -> ()
    %42 = tpu.reciprocal %39 {approx = true} : vector<2x16x1xf32> -> vector<2x16x1xf32>
    %43 = vector.broadcast %42 : vector<2x16x1xf32> to vector<2x16x8xf32>
    %44 = arith.mulf %41, %43 : vector<2x16x8xf32>
    %c0_27 = arith.constant 0 : index
    %c0_28 = arith.constant 0 : index
    %c8_29 = arith.constant 8 : index
    %45 = vector.load %arg8[%c0_27, %c0_28, %c8_29] : memref<2x16x32xf32, #tpu.memory_space<vmem>>, vector<2x16x8xf32>
    tpu.vector_store %arg8[%c0_27, %c0_28, %c8_29], %44 {strides = array<i32>} : memref<2x16x32xf32, #tpu.memory_space<vmem>>, vector<2x16x8xf32>,
    %c0_30 = arith.constant 0 : index
    %c0_31 = arith.constant 0 : index
    %c16 = arith.constant 16 : index
    %46 = vector.load %arg9[%c0_30, %c0_31, %c16] : memref<2x16x64xbf16, #tpu.memory_space<vmem>>, vector<2x16x8xbf16>
    %c0_32 = arith.constant 0 : index
    %c0_33 = arith.constant 0 : index
    %c48 = arith.constant 48 : index
    %47 = vector.load %arg9[%c0_32, %c0_33, %c48] : memref<2x16x64xbf16, #tpu.memory_space<vmem>>, vector<2x16x8xbf16>
    %48 = vector.extract_strided_slice %11 {offsets = [0, 0, 16], sizes = [2, 16, 8], strides = [1, 1, 1]} : vector<2x16x32xbf16> to vector<2x16x8xbf16>
    "tpu.trace_start"() <{level = 10 : i32, message = "bqd,bkd->bqk"}> : () -> ()
    %cst_34 = arith.constant dense<0.000000e+00> : vector<2x16x16xf32>
    %49 = tpu.matmul %48, %46, %cst_34 {dimension_numbers = #tpu.dot_dimension_numbers<[2], [2], [1], [1], [0, 0, 0, 1, 1, 1], [0], [0]>} : vector<2x16x8xbf16>, vector<2x16x8xbf16>, vector<2x16x16xf32> -> vector<2x16x16xf32>
    "tpu.trace_stop"() : () -> ()
    %cst_35 = arith.constant dense<0xFF800000> : vector<2x16xf32>
    %50 = vector.multi_reduction <maximumf>, %49, %cst_35 [2] : vector<2x16x16xf32> to vector<2x16xf32>
    %51 = vector.shape_cast %50 : vector<2x16xf32> to vector<2x16x1xf32>
    %52 = vector.broadcast %51 : vector<2x16x1xf32> to vector<2x16x16xf32>
    %53 = arith.subf %49, %52 : vector<2x16x16xf32>
    %54 = math.exp %53 : vector<2x16x16xf32>
    %cst_36 = arith.constant dense<0.000000e+00> : vector<2x16xf32>
    %55 = vector.multi_reduction <add>, %54, %cst_36 [2] : vector<2x16x16xf32> to vector<2x16xf32>
    %56 = vector.shape_cast %55 : vector<2x16xf32> to vector<2x16x1xf32>
    %57 = arith.truncf %54 : vector<2x16x16xf32> to vector<2x16x16xbf16>
    "tpu.trace_start"() <{level = 10 : i32, message = "bqk,bkd->bqd"}> : () -> ()
    %cst_37 = arith.constant dense<0.000000e+00> : vector<2x16x8xf32>
    %58 = tpu.matmul %57, %47, %cst_37 {dimension_numbers = #tpu.dot_dimension_numbers<[2], [1], [1], [2], [0, 0, 0, 1, 1, 2], [0], [0]>} : vector<2x16x16xbf16>, vector<2x16x8xbf16>, vector<2x16x8xf32> -> vector<2x16x8xf32>
    "tpu.trace_stop"() : () -> ()
    %59 = tpu.reciprocal %56 {approx = true} : vector<2x16x1xf32> -> vector<2x16x1xf32>
    %60 = vector.broadcast %59 : vector<2x16x1xf32> to vector<2x16x8xf32>
    %61 = arith.mulf %58, %60 : vector<2x16x8xf32>
    %c0_38 = arith.constant 0 : index
    %c0_39 = arith.constant 0 : index
    %c16_40 = arith.constant 16 : index
    %62 = vector.load %arg8[%c0_38, %c0_39, %c16_40] : memref<2x16x32xf32, #tpu.memory_space<vmem>>, vector<2x16x8xf32>
    tpu.vector_store %arg8[%c0_38, %c0_39, %c16_40], %61 {strides = array<i32>} : memref<2x16x32xf32, #tpu.memory_space<vmem>>, vector<2x16x8xf32>,
    %c0_41 = arith.constant 0 : index
    %c0_42 = arith.constant 0 : index
    %c24 = arith.constant 24 : index
    %63 = vector.load %arg9[%c0_41, %c0_42, %c24] : memref<2x16x64xbf16, #tpu.memory_space<vmem>>, vector<2x16x8xbf16>
    %c0_43 = arith.constant 0 : index
    %c0_44 = arith.constant 0 : index
    %c56 = arith.constant 56 : index
    %64 = vector.load %arg9[%c0_43, %c0_44, %c56] : memref<2x16x64xbf16, #tpu.memory_space<vmem>>, vector<2x16x8xbf16>
    %65 = vector.extract_strided_slice %11 {offsets = [0, 0, 24], sizes = [2, 16, 8], strides = [1, 1, 1]} : vector<2x16x32xbf16> to vector<2x16x8xbf16>
    "tpu.trace_start"() <{level = 10 : i32, message = "bqd,bkd->bqk"}> : () -> ()
    %cst_45 = arith.constant dense<0.000000e+00> : vector<2x16x16xf32>
    %66 = tpu.matmul %65, %63, %cst_45 {dimension_numbers = #tpu.dot_dimension_numbers<[2], [2], [1], [1], [0, 0, 0, 1, 1, 1], [0], [0]>} : vector<2x16x8xbf16>, vector<2x16x8xbf16>, vector<2x16x16xf32> -> vector<2x16x16xf32>
    "tpu.trace_stop"() : () -> ()
    %cst_46 = arith.constant dense<0xFF800000> : vector<2x16xf32>
    %67 = vector.multi_reduction <maximumf>, %66, %cst_46 [2] : vector<2x16x16xf32> to vector<2x16xf32>
    %68 = vector.shape_cast %67 : vector<2x16xf32> to vector<2x16x1xf32>
    %69 = vector.broadcast %68 : vector<2x16x1xf32> to vector<2x16x16xf32>
    %70 = arith.subf %66, %69 : vector<2x16x16xf32>
    %71 = math.exp %70 : vector<2x16x16xf32>
    %cst_47 = arith.constant dense<0.000000e+00> : vector<2x16xf32>
    %72 = vector.multi_reduction <add>, %71, %cst_47 [2] : vector<2x16x16xf32> to vector<2x16xf32>
    %73 = vector.shape_cast %72 : vector<2x16xf32> to vector<2x16x1xf32>
    %74 = arith.truncf %71 : vector<2x16x16xf32> to vector<2x16x16xbf16>
    "tpu.trace_start"() <{level = 10 : i32, message = "bqk,bkd->bqd"}> : () -> ()
    %cst_48 = arith.constant dense<0.000000e+00> : vector<2x16x8xf32>
    %75 = tpu.matmul %74, %64, %cst_48 {dimension_numbers = #tpu.dot_dimension_numbers<[2], [1], [1], [2], [0, 0, 0, 1, 1, 2], [0], [0]>} : vector<2x16x16xbf16>, vector<2x16x8xbf16>, vector<2x16x8xf32> -> vector<2x16x8xf32>
    "tpu.trace_stop"() : () -> ()
    %76 = tpu.reciprocal %73 {approx = true} : vector<2x16x1xf32> -> vector<2x16x1xf32>
    %77 = vector.broadcast %76 : vector<2x16x1xf32> to vector<2x16x8xf32>
    %78 = arith.mulf %75, %77 : vector<2x16x8xf32>
    %c0_49 = arith.constant 0 : index
    %c0_50 = arith.constant 0 : index
    %c24_51 = arith.constant 24 : index
    %79 = vector.load %arg8[%c0_49, %c0_50, %c24_51] : memref<2x16x32xf32, #tpu.memory_space<vmem>>, vector<2x16x8xf32>
    tpu.vector_store %arg8[%c0_49, %c0_50, %c24_51], %78 {strides = array<i32>} : memref<2x16x32xf32, #tpu.memory_space<vmem>>, vector<2x16x8xf32>,
    return
  }
  func.func @transform_0(%arg0: i32, %arg1: i32) -> (i32, i32, i32) {
    %c0_i32 = arith.constant 0 : i32
    %c0_i32_0 = arith.constant 0 : i32
    %c0_i32_1 = arith.constant 0 : i32
    return %arg0, %c0_i32, %c0_i32_0 : i32, i32, i32
  }
  func.func @transform_1(%arg0: i32, %arg1: i32) -> (i32, i32, i32) {
    %c0_i32 = arith.constant 0 : i32
    %c0_i32_0 = arith.constant 0 : i32
    return %arg0, %arg1, %c0_i32 : i32, i32, i32
  }
  func.func @transform_2(%arg0: i32, %arg1: i32) -> (i32, i32) {
    %c0_i32 = arith.constant 0 : i32
    %c0_i32_0 = arith.constant 0 : i32
    %c0_i32_1 = arith.constant 0 : i32
    return %c0_i32, %c0_i32_0 : i32, i32
  }
  func.func @transform_3(%arg0: i32, %arg1: i32) -> (i32, i32) {
    %c0_i32 = arith.constant 0 : i32
    %c0_i32_0 = arith.constant 0 : i32
    %c0_i32_1 = arith.constant 0 : i32
    return %c0_i32, %c0_i32_0 : i32, i32
  }
  func.func @transform_4(%arg0: i32, %arg1: i32) -> (i32, i32) {
    %c0_i32 = arith.constant 0 : i32
    %c0_i32_0 = arith.constant 0 : i32
    %c0_i32_1 = arith.constant 0 : i32
    return %c0_i32, %c0_i32_0 : i32, i32
  }
  func.func @transform_5(%arg0: i32, %arg1: i32) -> (i32, i32) {
    %c0_i32 = arith.constant 0 : i32
    %c0_i32_0 = arith.constant 0 : i32
    %c0_i32_1 = arith.constant 0 : i32
    return %c0_i32, %c0_i32_0 : i32, i32
  }
  func.func @transform_6(%arg0: i32, %arg1: i32) -> (i32, i32, i32) {
    %c0_i32 = arith.constant 0 : i32
    %c0_i32_0 = arith.constant 0 : i32
    return %arg0, %arg1, %c0_i32 : i32, i32, i32
  }
}

</mosaic_0001>

<llo_original>
// kernel: tpu_custom_call.1
$region0: #{tpu_custom_call.1}
  #allocation0 [shape = 'u32[]', space=smem, size = 0x4, offset = 0x4, fixed_abs, tag = 'smem constant byte address 0x4 - core index']
  #allocation1 [shape = 'u32[72,128]{1,0:T(1,128)}', space=vmem, size = 0x9000, scoped, tag = 'internal scratch']
  #allocation2 [shape = 'bf16[2,16,64]{2,1,0:T(8,128)(2,1)}', space=vmem, size = 0x2000, scoped, tag = 'scratch operand']
  %s0 = inlined_call_operand.hbm [shape: bf16[2,16,32], index: 0, kind: input, shape index: {}]
  %s1 = inlined_call_operand.hbm [shape: bf16[2,16,32], index: 1, kind: input, shape index: {}]
  %s2 = inlined_call_operand.hbm [shape: bf16[32,32], index: 2, kind: input, shape index: {}]
  %s3 = inlined_call_operand.vmem [shape: f32[1,32], index: 3, kind: input, shape index: {}]
  %s4 = inlined_call_operand.hbm [shape: bf16[32,64], index: 4, kind: input, shape index: {}]
  %s5 = inlined_call_operand.vmem [shape: f32[1,64], index: 5, kind: input, shape index: {}]
  %s6 = inlined_call_operand.hbm [shape: f32[2,16,32], index: 6, kind: output, shape index: {}]
  %s7 = sld [smem:[#allocation0]]
  $region54: #{tpu_custom_call.1} parent=0
    _
  %s9 = ssub.s32 1, %s7
  %s10 = scalar_select 0, %s9, %s7
  $region1: #{tpu_custom_call.1} parent=0
    #allocation3 [shape = 'u8[8192]{0}', space=vmem, size = 0x2000, scoped, tag = 'input window, operand 0, single buffered']
    #allocation4 [shape = 's32[1]{0}', space=sflag, size = 0x4, scoped, tag = 'scoped memory for tpu_custom_call.1']
    #allocation5 [shape = 's32[1]{0}', space=sflag, size = 0x4, scoped, tag = 'scoped memory for tpu_custom_call.1']
    #allocation6 [shape = 'u8[8192]{0}', space=vmem, size = 0x2000, scoped, tag = 'input window, operand 1, single buffered']
    #allocation7 [shape = 's32[1]{0}', space=sflag, size = 0x4, scoped, tag = 'scoped memory for tpu_custom_call.1']
    #allocation8 [shape = 'u8[8192]{0}', space=vmem, size = 0x2000, scoped, tag = 'input window, operand 2, single buffered']
    #allocation9 [shape = 'u8[8192]{0}', space=vmem, size = 0x2000, scoped, tag = 'input window, operand 4, single buffered']
    #allocation10 [shape = 's32[1]{0}', space=sflag, size = 0x4, scoped, tag = 'scoped memory for tpu_custom_call.1']
    #allocation11 [shape = 'u8[16384]{0}', space=vmem, size = 0x4000, scoped, tag = 'output window, operand 0, single buffered']
    %11 = vsyncpa [#allocation4], 0
    %12 = vsyncpa [#allocation7], 0
    %13 = vsyncpa [#allocation10], 0
    %14 = vsyncpa [#allocation5], 0
    // Predicated region
    $region2: #{tpu_custom_call.1} parent=1 // pred_check
      _
    $region3: #{tpu_custom_call.1} parent=1 // pred_check_branch
      %16 = sbr.rel (0) target = $region5
    $region4: #{tpu_custom_call.1} parent=1 // pred_region
      %18 = vsyncadd [#allocation4], 0
      %s19 = sshll.u32 %s0, 4
      %s20 = int_to_ptr.hbm [resolvable:$true] %s19
      %s21 = sshll.u32 [#allocation3], 4
      %s22 = int_to_ptr.vmem [resolvable:$true] %s21
      %27 = dma.hbm_to_vmem [thread:$0]  %s20, 256, %s22, [#allocation4], 64, 64, 4
    $region5: #{tpu_custom_call.1} parent=1 // pred_fallthru
      _
    // Predicated region
    $region6: #{tpu_custom_call.1} parent=1 // pred_check
      _
    $region7: #{tpu_custom_call.1} parent=1 // pred_check_branch
      %29 = sbr.rel (0) target = $region9
    $region8: #{tpu_custom_call.1} parent=1 // pred_region
      %31 = vsyncadd [#allocation7], 0
      %s32 = sshll.u32 %s1, 4
      %s33 = int_to_ptr.hbm [resolvable:$true] %s32
      %s34 = sshll.u32 [#allocation6], 4
      %s35 = int_to_ptr.vmem [resolvable:$true] %s34
      %40 = dma.hbm_to_vmem [thread:$0]  %s33, 256, %s35, [#allocation7], 64, 64, 4
    $region9: #{tpu_custom_call.1} parent=1 // pred_fallthru
      _
    // Predicated region
    $region10: #{tpu_custom_call.1} parent=1 // pred_check
      _
    $region11: #{tpu_custom_call.1} parent=1 // pred_check_branch
      %42 = sbr.rel (0) target = $region13
    $region12: #{tpu_custom_call.1} parent=1 // pred_region
      %44 = vsyncadd [#allocation7], 0
      %s45 = sshll.u32 %s2, 4
      %s46 = int_to_ptr.hbm [resolvable:$true] %s45
      %s47 = sshll.u32 [#allocation8], 4
      %s48 = int_to_ptr.vmem [resolvable:$true] %s47
      %53 = dma.hbm_to_vmem [thread:$0]  %s46, 256, %s48, [#allocation7], 64, 64, 4
    $region13: #{tpu_custom_call.1} parent=1 // pred_fallthru
      _
    // Predicated region
    $region14: #{tpu_custom_call.1} parent=1 // pred_check
      _
    $region15: #{tpu_custom_call.1} parent=1 // pred_check_branch
      %55 = sbr.rel (0) target = $region17
    $region16: #{tpu_custom_call.1} parent=1 // pred_region
      _
    $region17: #{tpu_custom_call.1} parent=1 // pred_fallthru
      _
    // Predicated region
    $region18: #{tpu_custom_call.1} parent=1 // pred_check
      _
    $region19: #{tpu_custom_call.1} parent=1 // pred_check_branch
      %57 = sbr.rel (0) target = $region21
    $region20: #{tpu_custom_call.1} parent=1 // pred_region
      %59 = vsyncadd [#allocation10], 0
      %s60 = sshll.u32 %s4, 4
      %s61 = int_to_ptr.hbm [resolvable:$true] %s60
      %s62 = sshll.u32 [#allocation9], 4
      %s63 = int_to_ptr.vmem [resolvable:$true] %s62
      %68 = dma.hbm_to_vmem [thread:$0]  %s61, 256, %s63, [#allocation10], 64, 64, 4
    $region21: #{tpu_custom_call.1} parent=1 // pred_fallthru
      _
    // Predicated region
    $region22: #{tpu_custom_call.1} parent=1 // pred_check
      _
    $region23: #{tpu_custom_call.1} parent=1 // pred_check_branch
      %70 = sbr.rel (0) target = $region25
    $region24: #{tpu_custom_call.1} parent=1 // pred_region
      _
    $region25: #{tpu_custom_call.1} parent=1 // pred_fallthru
      _
    // Predicated region
    $region26: #{tpu_custom_call.1} parent=1 // pred_check
      _
    $region27: #{tpu_custom_call.1} parent=1 // pred_check_branch
      %72 = sbr.rel (0) target = $region29
    $region28: #{tpu_custom_call.1} parent=1 // pred_region
      %74 = dma.done [#allocation4], 256
    $region29: #{tpu_custom_call.1} parent=1 // pred_fallthru
      _
    // Predicated region
    $region30: #{tpu_custom_call.1} parent=1 // pred_check
      _
    $region31: #{tpu_custom_call.1} parent=1 // pred_check_branch
      %76 = sbr.rel (0) target = $region33
    $region32: #{tpu_custom_call.1} parent=1 // pred_region
      %78 = dma.done [#allocation7], 256
    $region33: #{tpu_custom_call.1} parent=1 // pred_fallthru
      _
    // Predicated region
    $region34: #{tpu_custom_call.1} parent=1 // pred_check
      _
    $region35: #{tpu_custom_call.1} parent=1 // pred_check_branch
      %80 = sbr.rel (0) target = $region37
    $region36: #{tpu_custom_call.1} parent=1 // pred_region
      %82 = dma.done [#allocation7], 256
    $region37: #{tpu_custom_call.1} parent=1 // pred_fallthru
      _
    // Predicated region
    $region38: #{tpu_custom_call.1} parent=1 // pred_check
      _
    $region39: #{tpu_custom_call.1} parent=1 // pred_check_branch
      %84 = sbr.rel (0) target = $region41
    $region40: #{tpu_custom_call.1} parent=1 // pred_region
      %86 = dma.done [#allocation10], 256
    $region41: #{tpu_custom_call.1} parent=1 // pred_fallthru
      _
    %p88 = scmp.eq.s32.totalorder 0, 0
    // Predicated region
    $region42: #{tpu_custom_call.1} parent=1 // pred_check
      %p89 = pneg %p88
    $region43: #{tpu_custom_call.1} parent=1 // pred_check_branch
      %91 = sbr.rel (%p89) target = $region45
    $region44: #{tpu_custom_call.1} parent=1 // pred_region
      %v92 = vld [vmem:[#allocation3] sm:$0xf]
      %v93 = vld [vmem:[#allocation3 + $0x4] sm:$0xf]
      %v94 = vld [vmem:[#allocation3 + $0x8] sm:$0xf]
      %v95 = vld [vmem:[#allocation3 + $0xc] sm:$0xf]
      %v96 = vld [vmem:[#allocation9] sm:$0xf]
      %v97 = vld [vmem:[#allocation9 + $0x4] sm:$0xf]
      %v98 = vld [vmem:[#allocation9 + $0x8] sm:$0xf]
      %v99 = vld [vmem:[#allocation9 + $0xc] sm:$0xf]
      %v100 = vld [vmem:[%s5] sm:$0x1]
      %v102 = vperm.slane %v100, 0
      %v108 = vunpack.c.l.b16 %v92
      %v109 = vunpack.c.l.b16 %v93
      %v110 = vunpack.c.l.b16 %v94
      %v111 = vunpack.c.l.b16 %v95
      %v112 = vpack.c.b16 %v109, %v108
      %v113 = vpack.c.b16 %v111, %v110
      %v118 = vunpack.c.l.b16 %v96
      %v119 = vunpack.c.l.b16 %v97
      %v120 = vunpack.c.l.b16 %v98
      %v121 = vunpack.c.l.b16 %v99
      %v122 = vpack.c.b16 %v119, %v118
      %v123 = vpack.c.b16 %v121, %v120
      %vm126 = vcmask 261120
      %v128 = vsel %vm126, %v112, 0
      %v131 = vsel %vm126, %v113, 0
      %133 = vmatpush.bf16.msra.mxu0 0
      %134 = vmatpush.bf16.msra.mxu0 0
      %135 = vmatpush.bf16.msra.mxu0 0
      %136 = vmatpush.bf16.msra.mxu0 0
      %137 = vmatpush.bf16.msra.mxu0 0
      %138 = vmatpush.bf16.msra.mxu0 0
      %139 = vmatpush.bf16.msra.mxu0 %v123
      %140 = vmatpush.bf16.msra.mxu0 %v122
      %141 = vmatmul.bf16.gmra.mxu0 %v128
      %v142 = vpop.f32.mrf.mxu0
      %v143 = vadd.f32 %v102, %v142
      %v144 = vpop.f32.mrf.mxu0
      %v145 = vadd.f32 %v102, %v144
      %146 = vmatmul.bf16.gmra.mxu0 %v131
      %v147 = vpop.f32.mrf.mxu0
      %v148 = vadd.f32 %v102, %v147
      %v149 = vpop.f32.mrf.mxu0
      %v150 = vadd.f32 %v102, %v149
      %151 = vdwg.mxu0
      %v152 = vpack.c.bf16 %v143, %v143
      %v153 = vpack.c.bf16 %v145, %v145
      %v154 = vpack.c.bf16 %v148, %v148
      %v155 = vpack.c.bf16 %v150, %v150
      %vm156 = vcmask 519168
      %157 = vst.msk [vmem:[#allocation2] sm:$0xf] %vm156, %v152
      %158 = vst.msk [vmem:[#allocation2 + $0x4] sm:$0xf] %vm156, %v153
      %159 = vst.msk [vmem:[#allocation2 + $0x8] sm:$0xf] %vm156, %v154
      %160 = vst.msk [vmem:[#allocation2 + $0xc] sm:$0xf] %vm156, %v155
    $region45: #{tpu_custom_call.1} parent=1 // pred_fallthru
      _
    %v161 = vld [vmem:[#allocation6] sm:$0xf]
    %v162 = vld [vmem:[#allocation6 + $0x4] sm:$0xf]
    %v163 = vld [vmem:[#allocation6 + $0x8] sm:$0xf]
    %v164 = vld [vmem:[#allocation6 + $0xc] sm:$0xf]
    %v165 = vld [vmem:[#allocation8] sm:$0xf]
    %v166 = vld [vmem:[#allocation8 + $0x4] sm:$0xf]
    %v167 = vld [vmem:[#allocation8 + $0x8] sm:$0xf]
    %v168 = vld [vmem:[#allocation8 + $0xc] sm:$0xf]
    %v169 = vld [vmem:[%s3] sm:$0x1]
    %v171 = vperm.slane %v169, 0
    %v177 = vunpack.c.l.b16 %v161
    %v178 = vunpack.c.l.b16 %v162
    %v179 = vunpack.c.l.b16 %v163
    %v180 = vunpack.c.l.b16 %v164
    %v181 = vpack.c.b16 %v178, %v177
    %v182 = vpack.c.b16 %v180, %v179
    %v187 = vunpack.c.l.b16 %v165
    %v188 = vunpack.c.l.b16 %v166
    %v189 = vunpack.c.l.b16 %v167
    %v190 = vunpack.c.l.b16 %v168
    %v191 = vpack.c.b16 %v188, %v187
    %v192 = vpack.c.b16 %v190, %v189
    %vm195 = vcmask 261120
    %v197 = vsel %vm195, %v181, 0
    %v200 = vsel %vm195, %v182, 0
    %202 = vmatpush.bf16.msra.mxu0 0
    %203 = vmatpush.bf16.msra.mxu0 0
    %204 = vmatpush.bf16.msra.mxu0 0
    %205 = vmatpush.bf16.msra.mxu0 0
    %206 = vmatpush.bf16.msra.mxu0 0
    %207 = vmatpush.bf16.msra.mxu0 0
    %208 = vmatpush.bf16.msra.mxu0 %v192
    %209 = vmatpush.bf16.msra.mxu0 %v191
    %210 = vmatmul.bf16.gmra.mxu0 %v197
    %v211 = vpop.f32.mrf.mxu0
    %v212 = vadd.f32 %v171, %v211
    %v213 = vpop.f32.mrf.mxu0
    %v214 = vadd.f32 %v171, %v213
    %215 = vmatmul.bf16.gmra.mxu0 %v200
    %v216 = vpop.f32.mrf.mxu0
    %v217 = vadd.f32 %v171, %v216
    %v218 = vpop.f32.mrf.mxu0
    %v219 = vadd.f32 %v171, %v218
    %220 = vdwg.mxu0
    %v221 = vpack.c.bf16 %v212, %v212
    %v222 = vpack.c.bf16 %v214, %v214
    %v223 = vpack.c.bf16 %v217, %v217
    %v224 = vpack.c.bf16 %v219, %v219
    %v225 = vld [vmem:[#allocation2] sm:$0xf]
    %v226 = vld [vmem:[#allocation2 + $0x4] sm:$0xf]
    %v227 = vld [vmem:[#allocation2 + $0x8] sm:$0xf]
    %v228 = vld [vmem:[#allocation2 + $0xc] sm:$0xf]
    %v231 = vunpack.c.l.b16 %v221
    %v232 = vunpack.c.l.b16 %v222
    %v233 = vpack.c.b16 %v232, %v231
    %v236 = vunpack.c.l.b16 %v225
    %v237 = vunpack.c.l.b16 %v226
    %v238 = vpack.c.b16 %v237, %v236
    %vm239 = vcmask 64512
    %v241 = vsel %vm239, %v233, 0
    %v244 = vsel %vm239, %v238, 0
    %246 = vmatpush.bf16.xpose.msra.mxu0 0
    %247 = vmatpush.bf16.xpose.msra.mxu0 0
    %248 = vmatpush.bf16.xpose.msra.mxu0 0
    %249 = vmatpush.bf16.xpose.msra.mxu0 0
    %250 = vmatpush.bf16.xpose.msra.mxu0 0
    %251 = vmatpush.bf16.xpose.msra.mxu0 0
    %252 = vmatpush.bf16.xpose.msra.mxu0 0
    %253 = vmatpush.bf16.xpose.msra.mxu0 %v244
    %254 = vmatmul.bf16.gmra.mxu0 %v241
    %v255 = vpop.f32.mrf.mxu0
    %v256 = vadd.f32 0.0, %v255
    %v257 = vpop.f32.mrf.mxu0
    %v258 = vadd.f32 0.0, %v257
    %259 = vdwg.mxu0
    %v262 = vunpack.c.l.b16 %v223
    %v263 = vunpack.c.l.b16 %v224
    %v264 = vpack.c.b16 %v263, %v262
    %v267 = vunpack.c.l.b16 %v227
    %v268 = vunpack.c.l.b16 %v228
    %v269 = vpack.c.b16 %v268, %v267
    %v271 = vsel %vm239, %v264, 0
    %v274 = vsel %vm239, %v269, 0
    %276 = vmatpush.bf16.xpose.msra.mxu0 0
    %277 = vmatpush.bf16.xpose.msra.mxu0 0
    %278 = vmatpush.bf16.xpose.msra.mxu0 0
    %279 = vmatpush.bf16.xpose.msra.mxu0 0
    %280 = vmatpush.bf16.xpose.msra.mxu0 0
    %281 = vmatpush.bf16.xpose.msra.mxu0 0
    %282 = vmatpush.bf16.xpose.msra.mxu0 0
    %283 = vmatpush.bf16.xpose.msra.mxu0 %v274
    %284 = vmatmul.bf16.gmra.mxu0 %v271
    %v285 = vpop.f32.mrf.mxu0
    %v286 = vadd.f32 0.0, %v285
    %v287 = vpop.f32.mrf.mxu0
    %v288 = vadd.f32 0.0, %v287
    %289 = vdwg.mxu0
    %vm290 = vcmask 130048
    %v291 = vsel %vm290, %v256, -inf
    %292 = vmax.xlane.f32.xlu0 %v291
    %v293 = vpop.xlane.xlu0 %292
    %v294 = vsel %vm290, %v258, -inf
    %295 = vmax.xlane.f32.xlu0 %v294
    %v296 = vpop.xlane.xlu0 %295
    %v297 = vsel %vm290, %v286, -inf
    %298 = vmax.xlane.f32.xlu0 %v297
    %v299 = vpop.xlane.xlu0 %298
    %v300 = vsel %vm290, %v288, -inf
    %301 = vmax.xlane.f32.xlu0 %v300
    %v302 = vpop.xlane.xlu0 %301
    %v303 = vsub.f32 %v256, %v293
    %v304 = vsub.f32 %v258, %v296
    %v305 = vsub.f32 %v286, %v299
    %v306 = vsub.f32 %v288, %v302
    %v307 = vmul.f32 %v303, 1.442695
    %v308 = vpow.pop %v307
    %v309 = vmul.f32 %v304, 1.442695
    %v310 = vpow.pop %v309
    %v311 = vmul.f32 %v305, 1.442695
    %v312 = vpow.pop %v311
    %v313 = vmul.f32 %v306, 1.442695
    %v314 = vpow.pop %v313
    %v315 = vsel %vm290, %v308, 0.0
    %316 = vadd.xlane.f32.xlu0 %v315
    %v317 = vpop.xlane.xlu0 %316
    %v318 = vsel %vm290, %v310, 0.0
    %319 = vadd.xlane.f32.xlu0 %v318
    %v320 = vpop.xlane.xlu0 %319
    %v321 = vsel %vm290, %v312, 0.0
    %322 = vadd.xlane.f32.xlu0 %v321
    %v323 = vpop.xlane.xlu0 %322
    %v324 = vsel %vm290, %v314, 0.0
    %325 = vadd.xlane.f32.xlu0 %v324
    %v326 = vpop.xlane.xlu0 %325
    %v327 = vpack.c.bf16 %v308, %v308
    %v328 = vpack.c.bf16 %v310, %v310
    %v329 = vpack.c.bf16 %v312, %v312
    %v330 = vpack.c.bf16 %v314, %v314
    %v333 = vunpack.c.l.b16 %v327
    %v334 = vunpack.c.l.b16 %v328
    %v335 = vpack.c.b16 %v334, %v333
    %336 = vrot.lane.b32.xlu0 %v238, 96
    %v337 = vpop.permute.xlu0 %336
    %v340 = vsel %vm290, %v335, 0
    %342 = vmatpush.bf16.msra.mxu0 0
    %343 = vmatpush.bf16.msra.mxu0 0
    %344 = vmatpush.bf16.msra.mxu0 0
    %345 = vmatpush.bf16.msra.mxu0 0
    %346 = vmatpush.bf16.msra.mxu0 0
    %347 = vmatpush.bf16.msra.mxu0 0
    %348 = vmatpush.bf16.msra.mxu0 0
    %349 = vmatpush.bf16.msra.mxu0 %v337
    %350 = vmatmul.bf16.gmra.mxu0 %v340
    %v351 = vpop.f32.mrf.mxu0
    %v352 = vadd.f32 0.0, %v351
    %v353 = vpop.f32.mrf.mxu0
    %v354 = vadd.f32 0.0, %v353
    %355 = vdwg.mxu0
    %v358 = vunpack.c.l.b16 %v329
    %v359 = vunpack.c.l.b16 %v330
    %v360 = vpack.c.b16 %v359, %v358
    %361 = vrot.lane.b32.xlu0 %v269, 96
    %v362 = vpop.permute.xlu0 %361
    %v365 = vsel %vm290, %v360, 0
    %367 = vmatpush.bf16.msra.mxu0 0
    %368 = vmatpush.bf16.msra.mxu0 0
    %369 = vmatpush.bf16.msra.mxu0 0
    %370 = vmatpush.bf16.msra.mxu0 0
    %371 = vmatpush.bf16.msra.mxu0 0
    %372 = vmatpush.bf16.msra.mxu0 0
    %373 = vmatpush.bf16.msra.mxu0 0
    %374 = vmatpush.bf16.msra.mxu0 %v362
    %375 = vmatmul.bf16.gmra.mxu0 %v365
    %v376 = vpop.f32.mrf.mxu0
    %v377 = vadd.f32 0.0, %v376
    %v378 = vpop.f32.mrf.mxu0
    %v379 = vadd.f32 0.0, %v378
    %380 = vdwg.mxu0
    %v381 = vrcp.pop %v317
    %v382 = vrcp.pop %v320
    %v383 = vrcp.pop %v323
    %v384 = vrcp.pop %v326
    %v385 = vmul.f32 %v352, %v381
    %v386 = vmul.f32 %v354, %v382
    %v387 = vmul.f32 %v377, %v383
    %v388 = vmul.f32 %v379, %v384
    %389 = vst.msk [vmem:[#allocation11] sm:$0xff] %vm239, %v385
    %390 = vst.msk [vmem:[#allocation11 + $0x8] sm:$0xff] %vm239, %v386
    %391 = vst.msk [vmem:[#allocation11 + $0x10] sm:$0xff] %vm239, %v387
    %392 = vst.msk [vmem:[#allocation11 + $0x18] sm:$0xff] %vm239, %v388
    %v393 = vld [vmem:[#allocation2] sm:$0xf]
    %v394 = vld [vmem:[#allocation2 + $0x4] sm:$0xf]
    %v395 = vld [vmem:[#allocation2 + $0x8] sm:$0xf]
    %v396 = vld [vmem:[#allocation2 + $0xc] sm:$0xf]
    %397 = vrot.lane.b32.xlu0 %v233, 120
    %v398 = vpop.permute.xlu0 %397
    %v401 = vunpack.c.l.b16 %v393
    %v402 = vunpack.c.l.b16 %v394
    %v403 = vpack.c.b16 %v402, %v401
    %404 = vrot.lane.b32.xlu0 %v403, 120
    %v405 = vpop.permute.xlu0 %404
    %v407 = vsel %vm239, %v398, 0
    %v410 = vsel %vm239, %v405, 0
    %412 = vmatpush.bf16.xpose.msra.mxu0 0
    %413 = vmatpush.bf16.xpose.msra.mxu0 0
    %414 = vmatpush.bf16.xpose.msra.mxu0 0
    %415 = vmatpush.bf16.xpose.msra.mxu0 0
    %416 = vmatpush.bf16.xpose.msra.mxu0 0
    %417 = vmatpush.bf16.xpose.msra.mxu0 0
    %418 = vmatpush.bf16.xpose.msra.mxu0 0
    %419 = vmatpush.bf16.xpose.msra.mxu0 %v410
    %420 = vmatmul.bf16.gmra.mxu0 %v407
    %v421 = vpop.f32.mrf.mxu0
    %v422 = vadd.f32 0.0, %v421
    %v423 = vpop.f32.mrf.mxu0
    %v424 = vadd.f32 0.0, %v423
    %425 = vdwg.mxu0
    %426 = vrot.lane.b32.xlu0 %v264, 120
    %v427 = vpop.permute.xlu0 %426
    %v430 = vunpack.c.l.b16 %v395
    %v431 = vunpack.c.l.b16 %v396
    %v432 = vpack.c.b16 %v431, %v430
    %433 = vrot.lane.b32.xlu0 %v432, 120
    %v434 = vpop.permute.xlu0 %433
    %v436 = vsel %vm239, %v427, 0
    %v439 = vsel %vm239, %v434, 0
    %441 = vmatpush.bf16.xpose.msra.mxu0 0
    %442 = vmatpush.bf16.xpose.msra.mxu0 0
    %443 = vmatpush.bf16.xpose.msra.mxu0 0
    %444 = vmatpush.bf16.xpose.msra.mxu0 0
    %445 = vmatpush.bf16.xpose.msra.mxu0 0
    %446 = vmatpush.bf16.xpose.msra.mxu0 0
    %447 = vmatpush.bf16.xpose.msra.mxu0 0
    %448 = vmatpush.bf16.xpose.msra.mxu0 %v439
    %449 = vmatmul.bf16.gmra.mxu0 %v436
    %v450 = vpop.f32.mrf.mxu0
    %v451 = vadd.f32 0.0, %v450
    %v452 = vpop.f32.mrf.mxu0
    %v453 = vadd.f32 0.0, %v452
    %454 = vdwg.mxu0
    %v455 = vsel %vm290, %v422, -inf
    %456 = vmax.xlane.f32.xlu0 %v455
    %v457 = vpop.xlane.xlu0 %456
    %v458 = vsel %vm290, %v424, -inf
    %459 = vmax.xlane.f32.xlu0 %v458
    %v460 = vpop.xlane.xlu0 %459
    %v461 = vsel %vm290, %v451, -inf
    %462 = vmax.xlane.f32.xlu0 %v461
    %v463 = vpop.xlane.xlu0 %462
    %v464 = vsel %vm290, %v453, -inf
    %465 = vmax.xlane.f32.xlu0 %v464
    %v466 = vpop.xlane.xlu0 %465
    %v467 = vsub.f32 %v422, %v457
    %v468 = vsub.f32 %v424, %v460
    %v469 = vsub.f32 %v451, %v463
    %v470 = vsub.f32 %v453, %v466
    %v471 = vmul.f32 %v467, 1.442695
    %v472 = vpow.pop %v471
    %v473 = vmul.f32 %v468, 1.442695
    %v474 = vpow.pop %v473
    %v475 = vmul.f32 %v469, 1.442695
    %v476 = vpow.pop %v475
    %v477 = vmul.f32 %v470, 1.442695
    %v478 = vpow.pop %v477
    %v479 = vsel %vm290, %v472, 0.0
    %480 = vadd.xlane.f32.xlu0 %v479
    %v481 = vpop.xlane.xlu0 %480
    %v482 = vsel %vm290, %v474, 0.0
    %483 = vadd.xlane.f32.xlu0 %v482
    %v484 = vpop.xlane.xlu0 %483
    %v485 = vsel %vm290, %v476, 0.0
    %486 = vadd.xlane.f32.xlu0 %v485
    %v487 = vpop.xlane.xlu0 %486
    %v488 = vsel %vm290, %v478, 0.0
    %489 = vadd.xlane.f32.xlu0 %v488
    %v490 = vpop.xlane.xlu0 %489
    %v491 = vpack.c.bf16 %v472, %v472
    %v492 = vpack.c.bf16 %v474, %v474
    %v493 = vpack.c.bf16 %v476, %v476
    %v494 = vpack.c.bf16 %v478, %v478
    %v497 = vunpack.c.l.b16 %v491
    %v498 = vunpack.c.l.b16 %v492
    %v499 = vpack.c.b16 %v498, %v497
    %500 = vrot.lane.b32.xlu0 %v403, 88
    %v501 = vpop.permute.xlu0 %500
    %v504 = vsel %vm290, %v499, 0
    %506 = vmatpush.bf16.msra.mxu0 0
    %507 = vmatpush.bf16.msra.mxu0 0
    %508 = vmatpush.bf16.msra.mxu0 0
    %509 = vmatpush.bf16.msra.mxu0 0
    %510 = vmatpush.bf16.msra.mxu0 0
    %511 = vmatpush.bf16.msra.mxu0 0
    %512 = vmatpush.bf16.msra.mxu0 0
    %513 = vmatpush.bf16.msra.mxu0 %v501
    %514 = vmatmul.bf16.gmra.mxu0 %v504
    %v515 = vpop.f32.mrf.mxu0
    %v516 = vadd.f32 0.0, %v515
    %v517 = vpop.f32.mrf.mxu0
    %v518 = vadd.f32 0.0, %v517
    %519 = vdwg.mxu0
    %v522 = vunpack.c.l.b16 %v493
    %v523 = vunpack.c.l.b16 %v494
    %v524 = vpack.c.b16 %v523, %v522
    %525 = vrot.lane.b32.xlu0 %v432, 88
    %v526 = vpop.permute.xlu0 %525
    %v529 = vsel %vm290, %v524, 0
    %531 = vmatpush.bf16.msra.mxu0 0
    %532 = vmatpush.bf16.msra.mxu0 0
    %533 = vmatpush.bf16.msra.mxu0 0
    %534 = vmatpush.bf16.msra.mxu0 0
    %535 = vmatpush.bf16.msra.mxu0 0
    %536 = vmatpush.bf16.msra.mxu0 0
    %537 = vmatpush.bf16.msra.mxu0 0
    %538 = vmatpush.bf16.msra.mxu0 %v526
    %539 = vmatmul.bf16.gmra.mxu0 %v529
    %v540 = vpop.f32.mrf.mxu0
    %v541 = vadd.f32 0.0, %v540
    %v542 = vpop.f32.mrf.mxu0
    %v543 = vadd.f32 0.0, %v542
    %544 = vdwg.mxu0
    %v545 = vrcp.pop %v481
    %v546 = vrcp.pop %v484
    %v547 = vrcp.pop %v487
    %v548 = vrcp.pop %v490
    %v549 = vmul.f32 %v516, %v545
    %v550 = vmul.f32 %v518, %v546
    %v551 = vmul.f32 %v541, %v547
    %v552 = vmul.f32 %v543, %v548
    %557 = vrot.lane.b32.xlu0 %v549, 8
    %v558 = vpop.permute.xlu0 %557
    %559 = vrot.lane.b32.xlu0 %v550, 8
    %v560 = vpop.permute.xlu0 %559
    %561 = vrot.lane.b32.xlu0 %v551, 8
    %v562 = vpop.permute.xlu0 %561
    %563 = vrot.lane.b32.xlu0 %v552, 8
    %v564 = vpop.permute.xlu0 %563
    %vm569 = vcmask 130112
    %570 = vst.msk [vmem:[#allocation11] sm:$0xff] %vm569, %v558
    %571 = vst.msk [vmem:[#allocation11 + $0x8] sm:$0xff] %vm569, %v560
    %572 = vst.msk [vmem:[#allocation11 + $0x10] sm:$0xff] %vm569, %v562
    %573 = vst.msk [vmem:[#allocation11 + $0x18] sm:$0xff] %vm569, %v564
    %v574 = vld [vmem:[#allocation2] sm:$0xf]
    %v575 = vld [vmem:[#allocation2 + $0x4] sm:$0xf]
    %v576 = vld [vmem:[#allocation2 + $0x8] sm:$0xf]
    %v577 = vld [vmem:[#allocation2 + $0xc] sm:$0xf]
    %578 = vrot.lane.b32.xlu0 %v233, 112
    %v579 = vpop.permute.xlu0 %578
    %v582 = vunpack.c.l.b16 %v574
    %v583 = vunpack.c.l.b16 %v575
    %v584 = vpack.c.b16 %v583, %v582
    %585 = vrot.lane.b32.xlu0 %v584, 112
    %v586 = vpop.permute.xlu0 %585
    %v588 = vsel %vm239, %v579, 0
    %v591 = vsel %vm239, %v586, 0
    %593 = vmatpush.bf16.xpose.msra.mxu0 0
    %594 = vmatpush.bf16.xpose.msra.mxu0 0
    %595 = vmatpush.bf16.xpose.msra.mxu0 0
    %596 = vmatpush.bf16.xpose.msra.mxu0 0
    %597 = vmatpush.bf16.xpose.msra.mxu0 0
    %598 = vmatpush.bf16.xpose.msra.mxu0 0
    %599 = vmatpush.bf16.xpose.msra.mxu0 0
    %600 = vmatpush.bf16.xpose.msra.mxu0 %v591
    %601 = vmatmul.bf16.gmra.mxu0 %v588
    %v602 = vpop.f32.mrf.mxu0
    %v603 = vadd.f32 0.0, %v602
    %v604 = vpop.f32.mrf.mxu0
    %v605 = vadd.f32 0.0, %v604
    %606 = vdwg.mxu0
    %607 = vrot.lane.b32.xlu0 %v264, 112
    %v608 = vpop.permute.xlu0 %607
    %v611 = vunpack.c.l.b16 %v576
    %v612 = vunpack.c.l.b16 %v577
    %v613 = vpack.c.b16 %v612, %v611
    %614 = vrot.lane.b32.xlu0 %v613, 112
    %v615 = vpop.permute.xlu0 %614
    %v617 = vsel %vm239, %v608, 0
    %v620 = vsel %vm239, %v615, 0
    %622 = vmatpush.bf16.xpose.msra.mxu0 0
    %623 = vmatpush.bf16.xpose.msra.mxu0 0
    %624 = vmatpush.bf16.xpose.msra.mxu0 0
    %625 = vmatpush.bf16.xpose.msra.mxu0 0
    %626 = vmatpush.bf16.xpose.msra.mxu0 0
    %627 = vmatpush.bf16.xpose.msra.mxu0 0
    %628 = vmatpush.bf16.xpose.msra.mxu0 0
    %629 = vmatpush.bf16.xpose.msra.mxu0 %v620
    %630 = vmatmul.bf16.gmra.mxu0 %v617
    %v631 = vpop.f32.mrf.mxu0
    %v632 = vadd.f32 0.0, %v631
    %v633 = vpop.f32.mrf.mxu0
    %v634 = vadd.f32 0.0, %v633
    %635 = vdwg.mxu0
    %v636 = vsel %vm290, %v603, -inf
    %637 = vmax.xlane.f32.xlu0 %v636
    %v638 = vpop.xlane.xlu0 %637
    %v639 = vsel %vm290, %v605, -inf
    %640 = vmax.xlane.f32.xlu0 %v639
    %v641 = vpop.xlane.xlu0 %640
    %v642 = vsel %vm290, %v632, -inf
    %643 = vmax.xlane.f32.xlu0 %v642
    %v644 = vpop.xlane.xlu0 %643
    %v645 = vsel %vm290, %v634, -inf
    %646 = vmax.xlane.f32.xlu0 %v645
    %v647 = vpop.xlane.xlu0 %646
    %v648 = vsub.f32 %v603, %v638
    %v649 = vsub.f32 %v605, %v641
    %v650 = vsub.f32 %v632, %v644
    %v651 = vsub.f32 %v634, %v647
    %v652 = vmul.f32 %v648, 1.442695
    %v653 = vpow.pop %v652
    %v654 = vmul.f32 %v649, 1.442695
    %v655 = vpow.pop %v654
    %v656 = vmul.f32 %v650, 1.442695
    %v657 = vpow.pop %v656
    %v658 = vmul.f32 %v651, 1.442695
    %v659 = vpow.pop %v658
    %v660 = vsel %vm290, %v653, 0.0
    %661 = vadd.xlane.f32.xlu0 %v660
    %v662 = vpop.xlane.xlu0 %661
    %v663 = vsel %vm290, %v655, 0.0
    %664 = vadd.xlane.f32.xlu0 %v663
    %v665 = vpop.xlane.xlu0 %664
    %v666 = vsel %vm290, %v657, 0.0
    %667 = vadd.xlane.f32.xlu0 %v666
    %v668 = vpop.xlane.xlu0 %667
    %v669 = vsel %vm290, %v659, 0.0
    %670 = vadd.xlane.f32.xlu0 %v669
    %v671 = vpop.xlane.xlu0 %670
    %v672 = vpack.c.bf16 %v653, %v653
    %v673 = vpack.c.bf16 %v655, %v655
    %v674 = vpack.c.bf16 %v657, %v657
    %v675 = vpack.c.bf16 %v659, %v659
    %v678 = vunpack.c.l.b16 %v672
    %v679 = vunpack.c.l.b16 %v673
    %v680 = vpack.c.b16 %v679, %v678
    %681 = vrot.lane.b32.xlu0 %v584, 80
    %v682 = vpop.permute.xlu0 %681
    %v685 = vsel %vm290, %v680, 0
    %687 = vmatpush.bf16.msra.mxu0 0
    %688 = vmatpush.bf16.msra.mxu0 0
    %689 = vmatpush.bf16.msra.mxu0 0
    %690 = vmatpush.bf16.msra.mxu0 0
    %691 = vmatpush.bf16.msra.mxu0 0
    %692 = vmatpush.bf16.msra.mxu0 0
    %693 = vmatpush.bf16.msra.mxu0 0
    %694 = vmatpush.bf16.msra.mxu0 %v682
    %695 = vmatmul.bf16.gmra.mxu0 %v685
    %v696 = vpop.f32.mrf.mxu0
    %v697 = vadd.f32 0.0, %v696
    %v698 = vpop.f32.mrf.mxu0
    %v699 = vadd.f32 0.0, %v698
    %700 = vdwg.mxu0
    %v703 = vunpack.c.l.b16 %v674
    %v704 = vunpack.c.l.b16 %v675
    %v705 = vpack.c.b16 %v704, %v703
    %706 = vrot.lane.b32.xlu0 %v613, 80
    %v707 = vpop.permute.xlu0 %706
    %v710 = vsel %vm290, %v705, 0
    %712 = vmatpush.bf16.msra.mxu0 0
    %713 = vmatpush.bf16.msra.mxu0 0
    %714 = vmatpush.bf16.msra.mxu0 0
    %715 = vmatpush.bf16.msra.mxu0 0
    %716 = vmatpush.bf16.msra.mxu0 0
    %717 = vmatpush.bf16.msra.mxu0 0
    %718 = vmatpush.bf16.msra.mxu0 0
    %719 = vmatpush.bf16.msra.mxu0 %v707
    %720 = vmatmul.bf16.gmra.mxu0 %v710
    %v721 = vpop.f32.mrf.mxu0
    %v722 = vadd.f32 0.0, %v721
    %v723 = vpop.f32.mrf.mxu0
    %v724 = vadd.f32 0.0, %v723
    %725 = vdwg.mxu0
    %v726 = vrcp.pop %v662
    %v727 = vrcp.pop %v665
    %v728 = vrcp.pop %v668
    %v729 = vrcp.pop %v671
    %v730 = vmul.f32 %v697, %v726
    %v731 = vmul.f32 %v699, %v727
    %v732 = vmul.f32 %v722, %v728
    %v733 = vmul.f32 %v724, %v729
    %738 = vrot.lane.b32.xlu0 %v730, 16
    %v739 = vpop.permute.xlu0 %738
    %740 = vrot.lane.b32.xlu0 %v731, 16
    %v741 = vpop.permute.xlu0 %740
    %742 = vrot.lane.b32.xlu0 %v732, 16
    %v743 = vpop.permute.xlu0 %742
    %744 = vrot.lane.b32.xlu0 %v733, 16
    %v745 = vpop.permute.xlu0 %744
    %vm750 = vcmask 195712
    %751 = vst.msk [vmem:[#allocation11] sm:$0xff] %vm750, %v739
    %752 = vst.msk [vmem:[#allocation11 + $0x8] sm:$0xff] %vm750, %v741
    %753 = vst.msk [vmem:[#allocation11 + $0x10] sm:$0xff] %vm750, %v743
    %754 = vst.msk [vmem:[#allocation11 + $0x18] sm:$0xff] %vm750, %v745
    %v755 = vld [vmem:[#allocation2] sm:$0xf]
    %v756 = vld [vmem:[#allocation2 + $0x4] sm:$0xf]
    %v757 = vld [vmem:[#allocation2 + $0x8] sm:$0xf]
    %v758 = vld [vmem:[#allocation2 + $0xc] sm:$0xf]
    %759 = vrot.lane.b32.xlu0 %v233, 104
    %v760 = vpop.permute.xlu0 %759
    %v763 = vunpack.c.l.b16 %v755
    %v764 = vunpack.c.l.b16 %v756
    %v765 = vpack.c.b16 %v764, %v763
    %766 = vrot.lane.b32.xlu0 %v765, 104
    %v767 = vpop.permute.xlu0 %766
    %v769 = vsel %vm239, %v760, 0
    %v772 = vsel %vm239, %v767, 0
    %774 = vmatpush.bf16.xpose.msra.mxu0 0
    %775 = vmatpush.bf16.xpose.msra.mxu0 0
    %776 = vmatpush.bf16.xpose.msra.mxu0 0
    %777 = vmatpush.bf16.xpose.msra.mxu0 0
    %778 = vmatpush.bf16.xpose.msra.mxu0 0
    %779 = vmatpush.bf16.xpose.msra.mxu0 0
    %780 = vmatpush.bf16.xpose.msra.mxu0 0
    %781 = vmatpush.bf16.xpose.msra.mxu0 %v772
    %782 = vmatmul.bf16.gmra.mxu0 %v769
    %v783 = vpop.f32.mrf.mxu0
    %v784 = vadd.f32 0.0, %v783
    %v785 = vpop.f32.mrf.mxu0
    %v786 = vadd.f32 0.0, %v785
    %787 = vdwg.mxu0
    %788 = vrot.lane.b32.xlu0 %v264, 104
    %v789 = vpop.permute.xlu0 %788
    %v792 = vunpack.c.l.b16 %v757
    %v793 = vunpack.c.l.b16 %v758
    %v794 = vpack.c.b16 %v793, %v792
    %795 = vrot.lane.b32.xlu0 %v794, 104
    %v796 = vpop.permute.xlu0 %795
    %v798 = vsel %vm239, %v789, 0
    %v801 = vsel %vm239, %v796, 0
    %803 = vmatpush.bf16.xpose.msra.mxu0 0
    %804 = vmatpush.bf16.xpose.msra.mxu0 0
    %805 = vmatpush.bf16.xpose.msra.mxu0 0
    %806 = vmatpush.bf16.xpose.msra.mxu0 0
    %807 = vmatpush.bf16.xpose.msra.mxu0 0
    %808 = vmatpush.bf16.xpose.msra.mxu0 0
    %809 = vmatpush.bf16.xpose.msra.mxu0 0
    %810 = vmatpush.bf16.xpose.msra.mxu0 %v801
    %811 = vmatmul.bf16.gmra.mxu0 %v798
    %v812 = vpop.f32.mrf.mxu0
    %v813 = vadd.f32 0.0, %v812
    %v814 = vpop.f32.mrf.mxu0
    %v815 = vadd.f32 0.0, %v814
    %816 = vdwg.mxu0
    %v817 = vsel %vm290, %v784, -inf
    %818 = vmax.xlane.f32.xlu0 %v817
    %v819 = vpop.xlane.xlu0 %818
    %v820 = vsel %vm290, %v786, -inf
    %821 = vmax.xlane.f32.xlu0 %v820
    %v822 = vpop.xlane.xlu0 %821
    %v823 = vsel %vm290, %v813, -inf
    %824 = vmax.xlane.f32.xlu0 %v823
    %v825 = vpop.xlane.xlu0 %824
    %v826 = vsel %vm290, %v815, -inf
    %827 = vmax.xlane.f32.xlu0 %v826
    %v828 = vpop.xlane.xlu0 %827
    %v829 = vsub.f32 %v784, %v819
    %v830 = vsub.f32 %v786, %v822
    %v831 = vsub.f32 %v813, %v825
    %v832 = vsub.f32 %v815, %v828
    %v833 = vmul.f32 %v829, 1.442695
    %v834 = vpow.pop %v833
    %v835 = vmul.f32 %v830, 1.442695
    %v836 = vpow.pop %v835
    %v837 = vmul.f32 %v831, 1.442695
    %v838 = vpow.pop %v837
    %v839 = vmul.f32 %v832, 1.442695
    %v840 = vpow.pop %v839
    %v841 = vsel %vm290, %v834, 0.0
    %842 = vadd.xlane.f32.xlu0 %v841
    %v843 = vpop.xlane.xlu0 %842
    %v844 = vsel %vm290, %v836, 0.0
    %845 = vadd.xlane.f32.xlu0 %v844
    %v846 = vpop.xlane.xlu0 %845
    %v847 = vsel %vm290, %v838, 0.0
    %848 = vadd.xlane.f32.xlu0 %v847
    %v849 = vpop.xlane.xlu0 %848
    %v850 = vsel %vm290, %v840, 0.0
    %851 = vadd.xlane.f32.xlu0 %v850
    %v852 = vpop.xlane.xlu0 %851
    %v853 = vpack.c.bf16 %v834, %v834
    %v854 = vpack.c.bf16 %v836, %v836
    %v855 = vpack.c.bf16 %v838, %v838
    %v856 = vpack.c.bf16 %v840, %v840
    %v859 = vunpack.c.l.b16 %v853
    %v860 = vunpack.c.l.b16 %v854
    %v861 = vpack.c.b16 %v860, %v859
    %862 = vrot.lane.b32.xlu0 %v765, 72
    %v863 = vpop.permute.xlu0 %862
    %v866 = vsel %vm290, %v861, 0
    %868 = vmatpush.bf16.msra.mxu0 0
    %869 = vmatpush.bf16.msra.mxu0 0
    %870 = vmatpush.bf16.msra.mxu0 0
    %871 = vmatpush.bf16.msra.mxu0 0
    %872 = vmatpush.bf16.msra.mxu0 0
    %873 = vmatpush.bf16.msra.mxu0 0
    %874 = vmatpush.bf16.msra.mxu0 0
    %875 = vmatpush.bf16.msra.mxu0 %v863
    %876 = vmatmul.bf16.gmra.mxu0 %v866
    %v877 = vpop.f32.mrf.mxu0
    %v878 = vadd.f32 0.0, %v877
    %v879 = vpop.f32.mrf.mxu0
    %v880 = vadd.f32 0.0, %v879
    %881 = vdwg.mxu0
    %v884 = vunpack.c.l.b16 %v855
    %v885 = vunpack.c.l.b16 %v856
    %v886 = vpack.c.b16 %v885, %v884
    %887 = vrot.lane.b32.xlu0 %v794, 72
    %v888 = vpop.permute.xlu0 %887
    %v891 = vsel %vm290, %v886, 0
    %893 = vmatpush.bf16.msra.mxu0 0
    %894 = vmatpush.bf16.msra.mxu0 0
    %895 = vmatpush.bf16.msra.mxu0 0
    %896 = vmatpush.bf16.msra.mxu0 0
    %897 = vmatpush.bf16.msra.mxu0 0
    %898 = vmatpush.bf16.msra.mxu0 0
    %899 = vmatpush.bf16.msra.mxu0 0
    %900 = vmatpush.bf16.msra.mxu0 %v888
    %901 = vmatmul.bf16.gmra.mxu0 %v891
    %v902 = vpop.f32.mrf.mxu0
    %v903 = vadd.f32 0.0, %v902
    %v904 = vpop.f32.mrf.mxu0
    %v905 = vadd.f32 0.0, %v904
    %906 = vdwg.mxu0
    %v907 = vrcp.pop %v843
    %v908 = vrcp.pop %v846
    %v909 = vrcp.pop %v849
    %v910 = vrcp.pop %v852
    %v911 = vmul.f32 %v878, %v907
    %v912 = vmul.f32 %v880, %v908
    %v913 = vmul.f32 %v903, %v909
    %v914 = vmul.f32 %v905, %v910
    %919 = vrot.lane.b32.xlu0 %v911, 24
    %v920 = vpop.permute.xlu0 %919
    %921 = vrot.lane.b32.xlu0 %v912, 24
    %v922 = vpop.permute.xlu0 %921
    %923 = vrot.lane.b32.xlu0 %v913, 24
    %v924 = vpop.permute.xlu0 %923
    %925 = vrot.lane.b32.xlu0 %v914, 24
    %v926 = vpop.permute.xlu0 %925
    %vm931 = vcmask 261312
    %932 = vst.msk [vmem:[#allocation11] sm:$0xff] %vm931, %v920
    %933 = vst.msk [vmem:[#allocation11 + $0x8] sm:$0xff] %vm931, %v922
    %934 = vst.msk [vmem:[#allocation11 + $0x10] sm:$0xff] %vm931, %v924
    %935 = vst.msk [vmem:[#allocation11 + $0x18] sm:$0xff] %vm931, %v926
    // Predicated region
    $region46: #{tpu_custom_call.1} parent=1 // pred_check
      _
    $region47: #{tpu_custom_call.1} parent=1 // pred_check_branch
      %937 = sbr.rel (0) target = $region49
    $region48: #{tpu_custom_call.1} parent=1 // pred_region
      %939 = vsyncadd [#allocation5], 0
      %s940 = sshll.u32 [#allocation11], 4
      %s941 = int_to_ptr.vmem [resolvable:$true] %s940
      %s942 = sshll.u32 %s6, 4
      %s943 = int_to_ptr.hbm [resolvable:$true] %s942
      %948 = dma.vmem_to_hbm [thread:$0]  %s941, 512, %s943, [#allocation5], 128, 128, 8
    $region49: #{tpu_custom_call.1} parent=1 // pred_fallthru
      _
    // Predicated region
    $region50: #{tpu_custom_call.1} parent=1 // pred_check
      _
    $region51: #{tpu_custom_call.1} parent=1 // pred_check_branch
      %950 = sbr.rel (0) target = $region53
    $region52: #{tpu_custom_call.1} parent=1 // pred_region
      %952 = dma.done [#allocation5], 512
    $region53: #{tpu_custom_call.1} parent=1 // pred_fallthru
      _
    %953 = vsyncpa [#allocation4], 1
    %954 = vsyncpa [#allocation7], 1
    %955 = vsyncpa [#allocation10], 1
    %956 = vsyncpa [#allocation5], 1

</llo_original>
